<compile_context>
chip_gen: v5e
topology: v5e:2x2
jax: 0.10.0
libtpu: 0.0.40
codegen_flags: <defaults>
</compile_context>

<pallas_src>
import jax
import jax.numpy as jnp
from jax.experimental import pallas as pl
from jax.experimental.pallas import tpu as pltpu  # noqa: F401  (imported per harness contract)

# ---------------- small, shape-consistent config ----------------
B = 2            # batch
T = 16           # number of frames
T_FAST = 4       # fast-branch temporal length (T / 4)
IN_CHANNEL = 32  # frame_features channel dim (in_channel)
FAST_DIM = 16    # fast_feature_dim
SLOW_DIM = 32    # slow_feature_dim (unused, slow branch off)
FUSION_DIM = 16  # fusion_dim (branch_num = 1)
SIM_DIM = 32     # similarity_dim
TOPIC_NUM = 4    # topic_num
TOPIC_DIM = 16   # topic_embedding_dim
HIDDEN = 32      # score_mlp_hidden_dim
BN_EPS = 1e-5
SLAB_W = max(FAST_DIM, SIM_DIM, HIDDEN)   # packed-bias slab width


def _kaiming(key, shape):
    fan_in = shape[0]
    return jax.random.normal(key, shape, dtype=jnp.float32) * jnp.sqrt(2.0 / fan_in)


def init_params(key):
    """Raw (PyTorch-like) params, then folded/packed for the fused inference kernel."""
    ks = jax.random.split(key, 12)
    # fast GraphStream (simplified topic-conditioned transform)
    wg = _kaiming(ks[0], (FAST_DIM, FAST_DIM))
    bg = jnp.zeros((1, FAST_DIM), jnp.float32)
    wt_fast = _kaiming(ks[1], (TOPIC_DIM, FAST_DIM))
    bt_fast = jnp.zeros((1, FAST_DIM), jnp.float32)
    # SlowFastFusion ('dconv', fast branch only => branch_num * fusion_dim = FUSION_DIM)
    w_frame = _kaiming(ks[2], (IN_CHANNEL, FUSION_DIM))
    b_frame = jnp.zeros((1, FUSION_DIM), jnp.float32)
    w_fastp = _kaiming(ks[3], (FAST_DIM, FUSION_DIM))
    b_fastp = jnp.zeros((1, FUSION_DIM), jnp.float32)
    # SimilarityModule (inner product)
    w_sim = _kaiming(ks[4], (FUSION_DIM, SIM_DIM))
    b_sim = jnp.zeros((1, SIM_DIM), jnp.float32)
    wt_sim = _kaiming(ks[5], (TOPIC_DIM, SIM_DIM))
    bt_sim = jnp.zeros((1, SIM_DIM), jnp.float32)
    # score MLP: [Linear -> BN -> ReLU -> Dropout] x2 -> Linear -> Sigmoid
    w1 = _kaiming(ks[6], (SIM_DIM, HIDDEN))
    b1 = jnp.zeros((1, HIDDEN), jnp.float32)
    w2 = _kaiming(ks[7], (HIDDEN, HIDDEN))
    b2 = jnp.zeros((1, HIDDEN), jnp.float32)
    w3 = _kaiming(ks[8], (HIDDEN, 1))
    b3 = jnp.zeros((1, 1), jnp.float32)

    # ---- fold inference BatchNorm1d into the linear layers (eval mode) ----
    def bn_fold(w, b):
        gamma = jnp.ones((HIDDEN,), jnp.float32)
        beta = jnp.zeros((HIDDEN,), jnp.float32)
        mean = jnp.zeros((HIDDEN,), jnp.float32)
        var = jnp.ones((HIDDEN,), jnp.float32)
        scale = gamma / jnp.sqrt(var + BN_EPS)
        shift = beta - mean * scale
        return w * scale[None, :], b * scale[None, :] + shift[None, :]

    w1f, b1f = bn_fold(w1, b1)
    w2f, b2f = bn_fold(w2, b2)

    # ---- fold fusion biases through the (linear) similarity projection ----
    b_sim_eff = (b_frame + b_fastp) @ w_sim + b_sim          # (1, SIM_DIM)
    # ---- fold GraphStream bias into the topic-projection bias ----
    b_fast_eff = bt_fast + bg                                # (1, FAST_DIM)

    # ---- pack all remaining tiny (1, D) biases into one slab (single ref/DMA) ----
    slab = jnp.zeros((8, SLAB_W), jnp.float32)
    slab = slab.at[0, :FAST_DIM].set(b_fast_eff[0])
    slab = slab.at[1, :SIM_DIM].set(bt_sim[0])
    slab = slab.at[2, :SIM_DIM].set(b_sim_eff[0])
    slab = slab.at[3, :HIDDEN].set(b1f[0])
    slab = slab.at[4, :HIDDEN].set(b2f[0])
    slab = slab.at[5, 0].set(b3[0, 0])

    return {
        "wt_fast": wt_fast, "wt_sim": wt_sim, "wg": wg,
        "w_fastp": w_fastp, "w_frame": w_frame, "w_sim": w_sim,
        "w1f": w1f, "w2f": w2f,
        "w3r": w3.T,            # (1, HIDDEN) row, for the lane-dense final head
        "bias_slab": slab,
    }


# ---------------- fused Pallas kernel (single whole-array block, no grid) ----------------
def branch_score_fused_kernel(
    frame_ref, fast_ref, topic_ref,
    wt_fast_ref, wt_sim_ref, wg_ref, w_fastp_ref, w_frame_ref, w_sim_ref,
    w1_ref, w2_ref, w3_ref, bias_ref,
    out_ref,
):
    f32 = jnp.float32
    rows = frame_ref.shape[0]        # B*T
    rows_fast = fast_ref.shape[0]    # B*T_FAST
    batch = topic_ref.shape[0]       # B
    t_fast = rows_fast // batch
    t_full = rows // batch
    up = t_full // t_fast

    fast_dim = wt_fast_ref.shape[1]
    sim_dim = wt_sim_ref.shape[1]
    hid = w1_ref.shape[1]

    def expand(dst, src, factor):
        # 0/1 matrix M with M[d, s] = 1 iff d // factor == s (built without integer div)
        d = jax.lax.broadcasted_iota(jnp.int32, (dst, src), 0)
        s = jax.lax.broadcasted_iota(jnp.int32, (dst, src), 1)
        diff = d - s * factor
        return jnp.where((diff >= 0) & (diff < factor), 1.0, 0.0).astype(f32)

    e_fast = expand(rows_fast, batch, t_fast)   # (B*Tf, B)  batch -> fast rows
    e_full = expand(rows, batch, t_full)        # (B*T,  B)  batch -> frame rows
    upsamp = expand(rows, rows_fast, up)        # (B*T, B*Tf) nearest-neighbour upsample

    # packed biases (one VMEM slab, static sub-tile slices)
    b_fast = bias_ref[0:1, 0:fast_dim]   # GraphStream bias + topic-proj bias (folded)
    b_tsim = bias_ref[1:2, 0:sim_dim]
    b_simp = bias_ref[2:3, 0:sim_dim]    # fusion biases folded through w_sim + sim bias
    b_1 = bias_ref[3:4, 0:hid]           # BN1 folded
    b_2 = bias_ref[4:5, 0:hid]           # BN2 folded
    b_3 = bias_ref[5:6, 0:1]

    topic = topic_ref[...]                                                     # (B, TOPIC_DIM)

    # ---- fast GraphStream (simplified): relu(x @ Wg + topic_ctx + bias) ----
    ctx_f = jnp.dot(topic, wt_fast_ref[...], preferred_element_type=f32)        # (B, FAST)
    gx = jnp.dot(fast_ref[...], wg_ref[...], preferred_element_type=f32)        # (B*Tf, FAST)
    fast_h = jnp.maximum(
        gx + jnp.dot(e_fast, ctx_f, preferred_element_type=f32) + b_fast, 0.0)

    # ---- SlowFastFusion ('dconv', fast branch only) ----
    # project at the coarse temporal rate, then NN-upsample the projection (= upsample
    # then project, since both are linear) — one fewer full-rate matmul.
    fast_proj = jnp.dot(fast_h, w_fastp_ref[...], preferred_element_type=f32)   # (B*Tf, FUSION)
    fused = (jnp.dot(frame_ref[...], w_frame_ref[...], preferred_element_type=f32)
             + jnp.dot(upsamp, fast_proj, preferred_element_type=f32))          # (B*T, FUSION)

    # ---- SimilarityModule (inner product with projected topic embedding) ----
    ctx_s = jnp.dot(topic, wt_sim_ref[...], preferred_element_type=f32) + b_tsim  # (B, SIM)
    sim = ((jnp.dot(fused, w_sim_ref[...], preferred_element_type=f32) + b_simp)
           * jnp.dot(e_full, ctx_s, preferred_element_type=f32))                  # (B*T, SIM)

    # ---- score MLP: Linear -> BN(folded) -> ReLU -> Dropout(id), x2, Linear -> Sigmoid ----
    h = jnp.maximum(jnp.dot(sim, w1_ref[...], preferred_element_type=f32) + b_1, 0.0)
    h = jnp.maximum(jnp.dot(h, w2_ref[...], preferred_element_type=f32) + b_2, 0.0)
    # final 1-wide head contracted so rows land on the LANE axis -> lane-dense store
    logit = jax.lax.dot_general(
        w3_ref[...], h, (((1,), (1,)), ((), ())), preferred_element_type=f32) + b_3  # (1, B*T)
    # sigmoid via exp + EUP reciprocal
    out_ref[...] = pl.reciprocal(1.0 + jnp.exp(-logit), approx=True)


# ---------------- forward wrapper ----------------
def branch_score_net_forward(params, batch, seg_len, concept1, concept2,
                             topic_embeddings, video_features, frame_features,
                             slow_features, fast_features):
    # unused inputs in this configuration (fast branch only, output_mode='score')
    del batch, seg_len, concept1, concept2, video_features, slow_features

    Bn, Tn, Cin = frame_features.shape
    Tf = fast_features.shape[1]
    rows = Bn * Tn

    frame_flat = frame_features.reshape(rows, Cin)
    fast_flat = fast_features.reshape(Bn * Tf, fast_features.shape[2])
    # mean over topics commutes with the (linear) topic projections done in-kernel
    topic_mean = jnp.mean(topic_embeddings, axis=1)          # (B, TOPIC_DIM)

    score = pl.pallas_call(
        branch_score_fused_kernel,
        out_shape=jax.ShapeDtypeStruct((1, rows), jnp.float32),
        # no grid / BlockSpecs: single whole-array block per operand (rows = B*T = 32)
    )(frame_flat, fast_flat, topic_mean,
      params["wt_fast"], params["wt_sim"], params["wg"],
      params["w_fastp"], params["w_frame"], params["w_sim"],
      params["w1f"], params["w2f"], params["w3r"], params["bias_slab"])

    overall_score = score.reshape(Bn, Tn)   # == per-frame scores, squeeze(-1) semantics
    return overall_score, overall_score


if __name__ == "__main__":
    key = jax.random.PRNGKey(0)
    kp, kf, kff, ksl, kt, kv, kc1, kc2 = jax.random.split(key, 8)
    params = init_params(kp)

    frame_features = jax.random.normal(kff, (B, T, IN_CHANNEL), jnp.float32)
    fast_features = jax.random.normal(kf, (B, T_FAST, FAST_DIM), jnp.float32)
    slow_features = jax.random.normal(ksl, (B, 1, SLOW_DIM), jnp.float32)
    topic_embeddings = jax.random.normal(kt, (B, TOPIC_NUM, TOPIC_DIM), jnp.float32)
    video_features = jax.random.normal(kv, (B, T, IN_CHANNEL), jnp.float32)
    concept1 = jax.random.normal(kc1, (B, 8), jnp.float32)
    concept2 = jax.random.normal(kc2, (B, 8), jnp.float32)
    seg_len = jnp.full((B,), T, jnp.int32)
    batch = None

    forward = jax.jit(branch_score_net_forward)
    out, out2 = forward(params, batch, seg_len, concept1, concept2, topic_embeddings,
                        video_features, frame_features, slow_features, fast_features)
    jax.block_until_ready(out)

    assert out.shape == (B, T)
    assert bool(jnp.all(jnp.isfinite(out)))
    # sigmoid output; small tolerance for the EUP approximate reciprocal
    assert bool(jnp.all((out >= -1e-3) & (out <= 1.0 + 1e-3)))
    print("KERNEL_OK")
</pallas_src>

<mosaic_0001>
module attributes {stable_mosaic.version = 11 : i64} {
  func.func @branch_score_fused_kernel(%arg0: memref<32x32xf32, #tpu.memory_space<vmem>>, %arg1: memref<8x16xf32, #tpu.memory_space<vmem>>, %arg2: memref<2x16xf32, #tpu.memory_space<vmem>>, %arg3: memref<16x16xf32, #tpu.memory_space<vmem>>, %arg4: memref<16x32xf32, #tpu.memory_space<vmem>>, %arg5: memref<16x16xf32, #tpu.memory_space<vmem>>, %arg6: memref<16x16xf32, #tpu.memory_space<vmem>>, %arg7: memref<32x16xf32, #tpu.memory_space<vmem>>, %arg8: memref<16x32xf32, #tpu.memory_space<vmem>>, %arg9: memref<32x32xf32, #tpu.memory_space<vmem>>, %arg10: memref<32x32xf32, #tpu.memory_space<vmem>>, %arg11: memref<1x32xf32, #tpu.memory_space<vmem>>, %arg12: memref<8x32xf32, #tpu.memory_space<vmem>>, %arg13: memref<1x32xf32, #tpu.memory_space<vmem>>) attributes {dimension_semantics = [], scalar_prefetch = 0 : i64, scratch_operands = 0 : i64, tpu.core_type = #tpu.core_type<tc>} {
    %0 = tpu.iota {dimensions = array<i32: 0>} : vector<8x2xi32>
    %1 = tpu.iota {dimensions = array<i32: 1>} : vector<8x2xi32>
    %c4_i32 = arith.constant 4 : i32
    %2 = vector.broadcast %c4_i32 : i32 to vector<8x2xi32>
    %3 = arith.muli %1, %2 : vector<8x2xi32>
    %4 = arith.subi %0, %3 : vector<8x2xi32>
    %c0_i32 = arith.constant 0 : i32
    %5 = vector.broadcast %c0_i32 : i32 to vector<8x2xi32>
    %6 = arith.cmpi sge, %4, %5 : vector<8x2xi32>
    %c4_i32_0 = arith.constant 4 : i32
    %7 = vector.broadcast %c4_i32_0 : i32 to vector<8x2xi32>
    %8 = arith.cmpi slt, %4, %7 : vector<8x2xi32>
    %9 = arith.andi %6, %8 : vector<8x2xi1>
    %cst = arith.constant 1.000000e+00 : f32
    %cst_1 = arith.constant 0.000000e+00 : f32
    %10 = vector.broadcast %cst : f32 to vector<8x2xf32>
    %11 = vector.broadcast %cst_1 : f32 to vector<8x2xf32>
    %12 = arith.select %9, %10, %11 : vector<8x2xi1>, vector<8x2xf32>
    %13 = tpu.iota {dimensions = array<i32: 0>} : vector<32x2xi32>
    %14 = tpu.iota {dimensions = array<i32: 1>} : vector<32x2xi32>
    %c16_i32 = arith.constant 16 : i32
    %15 = vector.broadcast %c16_i32 : i32 to vector<32x2xi32>
    %16 = arith.muli %14, %15 : vector<32x2xi32>
    %17 = arith.subi %13, %16 : vector<32x2xi32>
    %c0_i32_2 = arith.constant 0 : i32
    %18 = vector.broadcast %c0_i32_2 : i32 to vector<32x2xi32>
    %19 = arith.cmpi sge, %17, %18 : vector<32x2xi32>
    %c16_i32_3 = arith.constant 16 : i32
    %20 = vector.broadcast %c16_i32_3 : i32 to vector<32x2xi32>
    %21 = arith.cmpi slt, %17, %20 : vector<32x2xi32>
    %22 = arith.andi %19, %21 : vector<32x2xi1>
    %cst_4 = arith.constant 1.000000e+00 : f32
    %cst_5 = arith.constant 0.000000e+00 : f32
    %23 = vector.broadcast %cst_4 : f32 to vector<32x2xf32>
    %24 = vector.broadcast %cst_5 : f32 to vector<32x2xf32>
    %25 = arith.select %22, %23, %24 : vector<32x2xi1>, vector<32x2xf32>
    %26 = tpu.iota {dimensions = array<i32: 0>} : vector<32x8xi32>
    %27 = tpu.iota {dimensions = array<i32: 1>} : vector<32x8xi32>
    %c4_i32_6 = arith.constant 4 : i32
    %28 = vector.broadcast %c4_i32_6 : i32 to vector<32x8xi32>
    %29 = arith.muli %27, %28 : vector<32x8xi32>
    %30 = arith.subi %26, %29 : vector<32x8xi32>
    %c0_i32_7 = arith.constant 0 : i32
    %31 = vector.broadcast %c0_i32_7 : i32 to vector<32x8xi32>
    %32 = arith.cmpi sge, %30, %31 : vector<32x8xi32>
    %c4_i32_8 = arith.constant 4 : i32
    %33 = vector.broadcast %c4_i32_8 : i32 to vector<32x8xi32>
    %34 = arith.cmpi slt, %30, %33 : vector<32x8xi32>
    %35 = arith.andi %32, %34 : vector<32x8xi1>
    %cst_9 = arith.constant 1.000000e+00 : f32
    %cst_10 = arith.constant 0.000000e+00 : f32
    %36 = vector.broadcast %cst_9 : f32 to vector<32x8xf32>
    %37 = vector.broadcast %cst_10 : f32 to vector<32x8xf32>
    %38 = arith.select %35, %36, %37 : vector<32x8xi1>, vector<32x8xf32>
    %c0 = arith.constant 0 : index
    %c0_11 = arith.constant 0 : index
    %39 = vector.load %arg12[%c0, %c0_11] : memref<8x32xf32, #tpu.memory_space<vmem>>, vector<1x16xf32>
    %c1 = arith.constant 1 : index
    %c0_12 = arith.constant 0 : index
    %40 = vector.load %arg12[%c1, %c0_12] : memref<8x32xf32, #tpu.memory_space<vmem>>, vector<1x32xf32>
    %c2 = arith.constant 2 : index
    %c0_13 = arith.constant 0 : index
    %41 = vector.load %arg12[%c2, %c0_13] : memref<8x32xf32, #tpu.memory_space<vmem>>, vector<1x32xf32>
    %c3 = arith.constant 3 : index
    %c0_14 = arith.constant 0 : index
    %42 = vector.load %arg12[%c3, %c0_14] : memref<8x32xf32, #tpu.memory_space<vmem>>, vector<1x32xf32>
    %c4 = arith.constant 4 : index
    %c0_15 = arith.constant 0 : index
    %43 = vector.load %arg12[%c4, %c0_15] : memref<8x32xf32, #tpu.memory_space<vmem>>, vector<1x32xf32>
    %c5 = arith.constant 5 : index
    %c0_16 = arith.constant 0 : index
    %44 = vector.load %arg12[%c5, %c0_16] : memref<8x32xf32, #tpu.memory_space<vmem>>, vector<1x1xf32>
    %c0_17 = arith.constant 0 : index
    %c0_18 = arith.constant 0 : index
    %45 = vector.load %arg2[%c0_17, %c0_18] : memref<2x16xf32, #tpu.memory_space<vmem>>, vector<2x16xf32>
    %c0_19 = arith.constant 0 : index
    %c0_20 = arith.constant 0 : index
    %46 = vector.load %arg3[%c0_19, %c0_20] : memref<16x16xf32, #tpu.memory_space<vmem>>, vector<16x16xf32>
    %cst_21 = arith.constant dense<0.000000e+00> : vector<2x16xf32>
    %47 = tpu.matmul %45, %46, %cst_21 {dimension_numbers = #tpu.dot_dimension_numbers<[1], [0], [0], [1], [0, 0, 1, 1], [], []>} : vector<2x16xf32>, vector<16x16xf32>, vector<2x16xf32> -> vector<2x16xf32>
    %c0_22 = arith.constant 0 : index
    %c0_23 = arith.constant 0 : index
    %48 = vector.load %arg1[%c0_22, %c0_23] : memref<8x16xf32, #tpu.memory_space<vmem>>, vector<8x16xf32>
    %c0_24 = arith.constant 0 : index
    %c0_25 = arith.constant 0 : index
    %49 = vector.load %arg5[%c0_24, %c0_25] : memref<16x16xf32, #tpu.memory_space<vmem>>, vector<16x16xf32>
    %cst_26 = arith.constant dense<0.000000e+00> : vector<8x16xf32>
    %50 = tpu.matmul %48, %49, %cst_26 {dimension_numbers = #tpu.dot_dimension_numbers<[1], [0], [0], [1], [0, 0, 1, 1], [], []>} : vector<8x16xf32>, vector<16x16xf32>, vector<8x16xf32> -> vector<8x16xf32>
    %cst_27 = arith.constant dense<0.000000e+00> : vector<8x16xf32>
    %51 = tpu.matmul %12, %47, %cst_27 {dimension_numbers = #tpu.dot_dimension_numbers<[1], [0], [0], [1], [0, 0, 1, 1], [], []>} : vector<8x2xf32>, vector<2x16xf32>, vector<8x16xf32> -> vector<8x16xf32>
    %52 = arith.addf %50, %51 : vector<8x16xf32>
    %53 = vector.broadcast %39 : vector<1x16xf32> to vector<8x16xf32>
    %54 = arith.addf %52, %53 : vector<8x16xf32>
    %cst_28 = arith.constant 0.000000e+00 : f32
    %55 = vector.broadcast %cst_28 : f32 to vector<8x16xf32>
    %56 = arith.maximumf %54, %55 : vector<8x16xf32>
    %c0_29 = arith.constant 0 : index
    %c0_30 = arith.constant 0 : index
    %57 = vector.load %arg6[%c0_29, %c0_30] : memref<16x16xf32, #tpu.memory_space<vmem>>, vector<16x16xf32>
    %cst_31 = arith.constant dense<0.000000e+00> : vector<8x16xf32>
    %58 = tpu.matmul %56, %57, %cst_31 {dimension_numbers = #tpu.dot_dimension_numbers<[1], [0], [0], [1], [0, 0, 1, 1], [], []>} : vector<8x16xf32>, vector<16x16xf32>, vector<8x16xf32> -> vector<8x16xf32>
    %c0_32 = arith.constant 0 : index
    %c0_33 = arith.constant 0 : index
    %59 = vector.load %arg0[%c0_32, %c0_33] : memref<32x32xf32, #tpu.memory_space<vmem>>, vector<32x32xf32>
    %c0_34 = arith.constant 0 : index
    %c0_35 = arith.constant 0 : index
    %60 = vector.load %arg7[%c0_34, %c0_35] : memref<32x16xf32, #tpu.memory_space<vmem>>, vector<32x16xf32>
    %cst_36 = arith.constant dense<0.000000e+00> : vector<32x16xf32>
    %61 = tpu.matmul %59, %60, %cst_36 {dimension_numbers = #tpu.dot_dimension_numbers<[1], [0], [0], [1], [0, 0, 1, 1], [], []>} : vector<32x32xf32>, vector<32x16xf32>, vector<32x16xf32> -> vector<32x16xf32>
    %cst_37 = arith.constant dense<0.000000e+00> : vector<32x16xf32>
    %62 = tpu.matmul %38, %58, %cst_37 {dimension_numbers = #tpu.dot_dimension_numbers<[1], [0], [0], [1], [0, 0, 1, 1], [], []>} : vector<32x8xf32>, vector<8x16xf32>, vector<32x16xf32> -> vector<32x16xf32>
    %63 = arith.addf %61, %62 : vector<32x16xf32>
    %c0_38 = arith.constant 0 : index
    %c0_39 = arith.constant 0 : index
    %64 = vector.load %arg4[%c0_38, %c0_39] : memref<16x32xf32, #tpu.memory_space<vmem>>, vector<16x32xf32>
    %cst_40 = arith.constant dense<0.000000e+00> : vector<2x32xf32>
    %65 = tpu.matmul %45, %64, %cst_40 {dimension_numbers = #tpu.dot_dimension_numbers<[1], [0], [0], [1], [0, 0, 1, 1], [], []>} : vector<2x16xf32>, vector<16x32xf32>, vector<2x32xf32> -> vector<2x32xf32>
    %66 = vector.broadcast %40 : vector<1x32xf32> to vector<2x32xf32>
    %67 = arith.addf %65, %66 : vector<2x32xf32>
    %c0_41 = arith.constant 0 : index
    %c0_42 = arith.constant 0 : index
    %68 = vector.load %arg8[%c0_41, %c0_42] : memref<16x32xf32, #tpu.memory_space<vmem>>, vector<16x32xf32>
    %cst_43 = arith.constant dense<0.000000e+00> : vector<32x32xf32>
    %69 = tpu.matmul %63, %68, %cst_43 {dimension_numbers = #tpu.dot_dimension_numbers<[1], [0], [0], [1], [0, 0, 1, 1], [], []>} : vector<32x16xf32>, vector<16x32xf32>, vector<32x32xf32> -> vector<32x32xf32>
    %70 = vector.broadcast %41 : vector<1x32xf32> to vector<32x32xf32>
    %71 = arith.addf %69, %70 : vector<32x32xf32>
    %cst_44 = arith.constant dense<0.000000e+00> : vector<32x32xf32>
    %72 = tpu.matmul %25, %67, %cst_44 {dimension_numbers = #tpu.dot_dimension_numbers<[1], [0], [0], [1], [0, 0, 1, 1], [], []>} : vector<32x2xf32>, vector<2x32xf32>, vector<32x32xf32> -> vector<32x32xf32>
    %73 = arith.mulf %71, %72 : vector<32x32xf32>
    %c0_45 = arith.constant 0 : index
    %c0_46 = arith.constant 0 : index
    %74 = vector.load %arg9[%c0_45, %c0_46] : memref<32x32xf32, #tpu.memory_space<vmem>>, vector<32x32xf32>
    %cst_47 = arith.constant dense<0.000000e+00> : vector<32x32xf32>
    %75 = tpu.matmul %73, %74, %cst_47 {dimension_numbers = #tpu.dot_dimension_numbers<[1], [0], [0], [1], [0, 0, 1, 1], [], []>} : vector<32x32xf32>, vector<32x32xf32>, vector<32x32xf32> -> vector<32x32xf32>
    %76 = vector.broadcast %42 : vector<1x32xf32> to vector<32x32xf32>
    %77 = arith.addf %75, %76 : vector<32x32xf32>
    %cst_48 = arith.constant 0.000000e+00 : f32
    %78 = vector.broadcast %cst_48 : f32 to vector<32x32xf32>
    %79 = arith.maximumf %77, %78 : vector<32x32xf32>
    %c0_49 = arith.constant 0 : index
    %c0_50 = arith.constant 0 : index
    %80 = vector.load %arg10[%c0_49, %c0_50] : memref<32x32xf32, #tpu.memory_space<vmem>>, vector<32x32xf32>
    %cst_51 = arith.constant dense<0.000000e+00> : vector<32x32xf32>
    %81 = tpu.matmul %79, %80, %cst_51 {dimension_numbers = #tpu.dot_dimension_numbers<[1], [0], [0], [1], [0, 0, 1, 1], [], []>} : vector<32x32xf32>, vector<32x32xf32>, vector<32x32xf32> -> vector<32x32xf32>
    %82 = vector.broadcast %43 : vector<1x32xf32> to vector<32x32xf32>
    %83 = arith.addf %81, %82 : vector<32x32xf32>
    %cst_52 = arith.constant 0.000000e+00 : f32
    %84 = vector.broadcast %cst_52 : f32 to vector<32x32xf32>
    %85 = arith.maximumf %83, %84 : vector<32x32xf32>
    %c0_53 = arith.constant 0 : index
    %c0_54 = arith.constant 0 : index
    %86 = vector.load %arg11[%c0_53, %c0_54] : memref<1x32xf32, #tpu.memory_space<vmem>>, vector<1x32xf32>
    %cst_55 = arith.constant dense<0.000000e+00> : vector<1x32xf32>
    %87 = tpu.matmul %86, %85, %cst_55 {dimension_numbers = #tpu.dot_dimension_numbers<[1], [1], [0], [0], [0, 0, 1, 0], [], []>} : vector<1x32xf32>, vector<32x32xf32>, vector<1x32xf32> -> vector<1x32xf32>
    %88 = vector.broadcast %44 : vector<1x1xf32> to vector<1x32xf32>
    %89 = arith.addf %87, %88 : vector<1x32xf32>
    %cst_56 = arith.constant 0.000000e+00 : f32
    %90 = vector.broadcast %cst_56 : f32 to vector<1x32xf32>
    %91 = arith.subf %90, %89 : vector<1x32xf32>
    %92 = math.exp %91 : vector<1x32xf32>
    %cst_57 = arith.constant 1.000000e+00 : f32
    %93 = vector.broadcast %cst_57 : f32 to vector<1x32xf32>
    %94 = arith.addf %93, %92 : vector<1x32xf32>
    %95 = tpu.reciprocal %94 {approx = true} : vector<1x32xf32> -> vector<1x32xf32>
    %c0_58 = arith.constant 0 : index
    %c0_59 = arith.constant 0 : index
    %96 = vector.load %arg13[%c0_58, %c0_59] : memref<1x32xf32, #tpu.memory_space<vmem>>, vector<1x32xf32>
    tpu.vector_store %arg13[%c0_58, %c0_59], %95 {strides = array<i32>} : memref<1x32xf32, #tpu.memory_space<vmem>>, vector<1x32xf32>,
    return
  }
}

</mosaic_0001>

<llo_original>
// kernel: branch_score_net_forward.1
$region0: #{branch_score_net_forward.1}
  #allocation0 [shape = 'u32[]', space=smem, size = 0x4, offset = 0x4, fixed_abs, tag = 'smem constant byte address 0x4 - core index']
  #allocation1 [shape = 'u32[72,128]{1,0:T(1,128)}', space=vmem, size = 0x9000, scoped, tag = 'internal scratch']
  %s0 = inlined_call_operand.vmem [shape: f32[32,32], index: 0, kind: input, shape index: {}]
  %s1 = inlined_call_operand.vmem [shape: f32[8,16], index: 1, kind: input, shape index: {}]
  %s2 = inlined_call_operand.vmem [shape: f32[2,16], index: 2, kind: input, shape index: {}]
  %s3 = inlined_call_operand.vmem [shape: f32[16,16], index: 3, kind: input, shape index: {}]
  %s4 = inlined_call_operand.hbm [shape: f32[16,32], index: 4, kind: input, shape index: {}]
  %s5 = inlined_call_operand.hbm [shape: f32[16,16], index: 5, kind: input, shape index: {}]
  %s6 = inlined_call_operand.hbm [shape: f32[16,16], index: 6, kind: input, shape index: {}]
  %s7 = inlined_call_operand.vmem [shape: f32[32,16], index: 7, kind: input, shape index: {}]
  %s8 = inlined_call_operand.hbm [shape: f32[16,32], index: 8, kind: input, shape index: {}]
  %s9 = inlined_call_operand.hbm [shape: f32[32,32], index: 9, kind: input, shape index: {}]
  %s10 = inlined_call_operand.hbm [shape: f32[32,32], index: 10, kind: input, shape index: {}]
  %s11 = inlined_call_operand.hbm [shape: f32[1,32], index: 11, kind: input, shape index: {}]
  %s12 = inlined_call_operand.vmem [shape: f32[8,32], index: 12, kind: input, shape index: {}]
  %s13 = inlined_call_operand.vmem [shape: f32[1,32], index: 13, kind: output, shape index: {}]
  %s14 = sld [smem:[#allocation0]]
  $region90: #{branch_score_net_forward.1} parent=0
    _
  %s16 = ssub.s32 1, %s14
  %s17 = scalar_select 0, %s16, %s14
  $region1: #{branch_score_net_forward.1} parent=0
    #allocation2 [shape = 'u8[8192]{0}', space=vmem, size = 0x2000, scoped, tag = 'input window, operand 4, single buffered']
    #allocation3 [shape = 's32[1]{0}', space=sflag, size = 0x4, scoped, tag = 'scoped memory for branch_score_net_forward.1']
    #allocation4 [shape = 'u8[8192]{0}', space=vmem, size = 0x2000, scoped, tag = 'input window, operand 5, single buffered']
    #allocation5 [shape = 's32[1]{0}', space=sflag, size = 0x4, scoped, tag = 'scoped memory for branch_score_net_forward.1']
    #allocation6 [shape = 'u8[8192]{0}', space=vmem, size = 0x2000, scoped, tag = 'input window, operand 6, single buffered']
    #allocation7 [shape = 'u8[8192]{0}', space=vmem, size = 0x2000, scoped, tag = 'input window, operand 8, single buffered']
    #allocation8 [shape = 's32[1]{0}', space=sflag, size = 0x4, scoped, tag = 'scoped memory for branch_score_net_forward.1']
    #allocation9 [shape = 'u8[16384]{0}', space=vmem, size = 0x4000, scoped, tag = 'input window, operand 9, single buffered']
    #allocation10 [shape = 'u8[16384]{0}', space=vmem, size = 0x4000, scoped, tag = 'input window, operand 10, single buffered']
    #allocation11 [shape = 's32[1]{0}', space=sflag, size = 0x4, scoped, tag = 'scoped memory for branch_score_net_forward.1']
    #allocation12 [shape = 'u8[512]{0}', space=vmem, size = 0x400, scoped, tag = 'input window, operand 11, single buffered']
    %18 = vsyncpa [#allocation3], 0
    %19 = vsyncpa [#allocation5], 0
    %20 = vsyncpa [#allocation8], 0
    %21 = vsyncpa [#allocation11], 0
    // Predicated region
    $region2: #{branch_score_net_forward.1} parent=1 // pred_check
      _
    $region3: #{branch_score_net_forward.1} parent=1 // pred_check_branch
      %23 = sbr.rel (0) target = $region5
    $region4: #{branch_score_net_forward.1} parent=1 // pred_region
      _
    $region5: #{branch_score_net_forward.1} parent=1 // pred_fallthru
      _
    // Predicated region
    $region6: #{branch_score_net_forward.1} parent=1 // pred_check
      _
    $region7: #{branch_score_net_forward.1} parent=1 // pred_check_branch
      %25 = sbr.rel (0) target = $region9
    $region8: #{branch_score_net_forward.1} parent=1 // pred_region
      _
    $region9: #{branch_score_net_forward.1} parent=1 // pred_fallthru
      _
    // Predicated region
    $region10: #{branch_score_net_forward.1} parent=1 // pred_check
      _
    $region11: #{branch_score_net_forward.1} parent=1 // pred_check_branch
      %27 = sbr.rel (0) target = $region13
    $region12: #{branch_score_net_forward.1} parent=1 // pred_region
      _
    $region13: #{branch_score_net_forward.1} parent=1 // pred_fallthru
      _
    // Predicated region
    $region14: #{branch_score_net_forward.1} parent=1 // pred_check
      _
    $region15: #{branch_score_net_forward.1} parent=1 // pred_check_branch
      %29 = sbr.rel (0) target = $region17
    $region16: #{branch_score_net_forward.1} parent=1 // pred_region
      _
    $region17: #{branch_score_net_forward.1} parent=1 // pred_fallthru
      _
    // Predicated region
    $region18: #{branch_score_net_forward.1} parent=1 // pred_check
      _
    $region19: #{branch_score_net_forward.1} parent=1 // pred_check_branch
      %31 = sbr.rel (0) target = $region21
    $region20: #{branch_score_net_forward.1} parent=1 // pred_region
      %33 = vsyncadd [#allocation3], 0
      %s34 = sshll.u32 %s4, 4
      %s35 = int_to_ptr.hbm [resolvable:$true] %s34
      %s36 = sshll.u32 [#allocation2], 4
      %s37 = int_to_ptr.vmem [resolvable:$true] %s36
      %42 = dma.hbm_to_vmem [thread:$0]  %s35, 256, %s37, [#allocation3], 128, 128, 8
    $region21: #{branch_score_net_forward.1} parent=1 // pred_fallthru
      _
    // Predicated region
    $region22: #{branch_score_net_forward.1} parent=1 // pred_check
      _
    $region23: #{branch_score_net_forward.1} parent=1 // pred_check_branch
      %44 = sbr.rel (0) target = $region25
    $region24: #{branch_score_net_forward.1} parent=1 // pred_region
      %46 = vsyncadd [#allocation5], 0
      %s47 = sshll.u32 %s5, 4
      %s48 = int_to_ptr.hbm [resolvable:$true] %s47
      %s49 = sshll.u32 [#allocation4], 4
      %s50 = int_to_ptr.vmem [resolvable:$true] %s49
      %55 = dma.hbm_to_vmem [thread:$0]  %s48, 256, %s50, [#allocation5], 128, 128, 8
    $region25: #{branch_score_net_forward.1} parent=1 // pred_fallthru
      _
    // Predicated region
    $region26: #{branch_score_net_forward.1} parent=1 // pred_check
      _
    $region27: #{branch_score_net_forward.1} parent=1 // pred_check_branch
      %57 = sbr.rel (0) target = $region29
    $region28: #{branch_score_net_forward.1} parent=1 // pred_region
      %59 = vsyncadd [#allocation5], 0
      %s60 = sshll.u32 %s6, 4
      %s61 = int_to_ptr.hbm [resolvable:$true] %s60
      %s62 = sshll.u32 [#allocation6], 4
      %s63 = int_to_ptr.vmem [resolvable:$true] %s62
      %68 = dma.hbm_to_vmem [thread:$0]  %s61, 256, %s63, [#allocation5], 128, 128, 8
    $region29: #{branch_score_net_forward.1} parent=1 // pred_fallthru
      _
    // Predicated region
    $region30: #{branch_score_net_forward.1} parent=1 // pred_check
      _
    $region31: #{branch_score_net_forward.1} parent=1 // pred_check_branch
      %70 = sbr.rel (0) target = $region33
    $region32: #{branch_score_net_forward.1} parent=1 // pred_region
      _
    $region33: #{branch_score_net_forward.1} parent=1 // pred_fallthru
      _
    // Predicated region
    $region34: #{branch_score_net_forward.1} parent=1 // pred_check
      _
    $region35: #{branch_score_net_forward.1} parent=1 // pred_check_branch
      %72 = sbr.rel (0) target = $region37
    $region36: #{branch_score_net_forward.1} parent=1 // pred_region
      %74 = vsyncadd [#allocation8], 0
      %s75 = sshll.u32 %s8, 4
      %s76 = int_to_ptr.hbm [resolvable:$true] %s75
      %s77 = sshll.u32 [#allocation7], 4
      %s78 = int_to_ptr.vmem [resolvable:$true] %s77
      %83 = dma.hbm_to_vmem [thread:$0]  %s76, 256, %s78, [#allocation8], 128, 128, 8
    $region37: #{branch_score_net_forward.1} parent=1 // pred_fallthru
      _
    // Predicated region
    $region38: #{branch_score_net_forward.1} parent=1 // pred_check
      _
    $region39: #{branch_score_net_forward.1} parent=1 // pred_check_branch
      %85 = sbr.rel (0) target = $region41
    $region40: #{branch_score_net_forward.1} parent=1 // pred_region
      %87 = vsyncadd [#allocation8], 0
      %s88 = sshll.u32 %s9, 4
      %s89 = int_to_ptr.hbm [resolvable:$true] %s88
      %s90 = sshll.u32 [#allocation9], 4
      %s91 = int_to_ptr.vmem [resolvable:$true] %s90
      %96 = dma.hbm_to_vmem [thread:$0]  %s89, 512, %s91, [#allocation8], 128, 128, 8
    $region41: #{branch_score_net_forward.1} parent=1 // pred_fallthru
      _
    // Predicated region
    $region42: #{branch_score_net_forward.1} parent=1 // pred_check
      _
    $region43: #{branch_score_net_forward.1} parent=1 // pred_check_branch
      %98 = sbr.rel (0) target = $region45
    $region44: #{branch_score_net_forward.1} parent=1 // pred_region
      %100 = vsyncadd [#allocation11], 0
      %s101 = sshll.u32 %s10, 4
      %s102 = int_to_ptr.hbm [resolvable:$true] %s101
      %s103 = sshll.u32 [#allocation10], 4
      %s104 = int_to_ptr.vmem [resolvable:$true] %s103
      %109 = dma.hbm_to_vmem [thread:$0]  %s102, 512, %s104, [#allocation11], 128, 128, 8
    $region45: #{branch_score_net_forward.1} parent=1 // pred_fallthru
      _
    // Predicated region
    $region46: #{branch_score_net_forward.1} parent=1 // pred_check
      _
    $region47: #{branch_score_net_forward.1} parent=1 // pred_check_branch
      %111 = sbr.rel (0) target = $region49
    $region48: #{branch_score_net_forward.1} parent=1 // pred_region
      %113 = vsyncadd [#allocation11], 0
      %s115 = sshll.u32 %s11, 4
      %s116 = int_to_ptr.hbm [resolvable:$true] %s115
      %s117 = sshll.u32 [#allocation12], 4
      %s118 = int_to_ptr.vmem [resolvable:$true] %s117
      %120 = dma.hbm_to_vmem [thread:$0]  %s116, 16, %s118, [#allocation11]
    $region49: #{branch_score_net_forward.1} parent=1 // pred_fallthru
      _
    // Predicated region
    $region50: #{branch_score_net_forward.1} parent=1 // pred_check
      _
    $region51: #{branch_score_net_forward.1} parent=1 // pred_check_branch
      %122 = sbr.rel (0) target = $region53
    $region52: #{branch_score_net_forward.1} parent=1 // pred_region
      _
    $region53: #{branch_score_net_forward.1} parent=1 // pred_fallthru
      _
    // Predicated region
    $region54: #{branch_score_net_forward.1} parent=1 // pred_check
      _
    $region55: #{branch_score_net_forward.1} parent=1 // pred_check_branch
      %124 = sbr.rel (0) target = $region57
    $region56: #{branch_score_net_forward.1} parent=1 // pred_region
      %126 = dma.done [#allocation3], 256
    $region57: #{branch_score_net_forward.1} parent=1 // pred_fallthru
      _
    // Predicated region
    $region58: #{branch_score_net_forward.1} parent=1 // pred_check
      _
    $region59: #{branch_score_net_forward.1} parent=1 // pred_check_branch
      %128 = sbr.rel (0) target = $region61
    $region60: #{branch_score_net_forward.1} parent=1 // pred_region
      %130 = dma.done [#allocation5], 256
    $region61: #{branch_score_net_forward.1} parent=1 // pred_fallthru
      _
    // Predicated region
    $region62: #{branch_score_net_forward.1} parent=1 // pred_check
      _
    $region63: #{branch_score_net_forward.1} parent=1 // pred_check_branch
      %132 = sbr.rel (0) target = $region65
    $region64: #{branch_score_net_forward.1} parent=1 // pred_region
      %134 = dma.done [#allocation5], 256
    $region65: #{branch_score_net_forward.1} parent=1 // pred_fallthru
      _
    // Predicated region
    $region66: #{branch_score_net_forward.1} parent=1 // pred_check
      _
    $region67: #{branch_score_net_forward.1} parent=1 // pred_check_branch
      %136 = sbr.rel (0) target = $region69
    $region68: #{branch_score_net_forward.1} parent=1 // pred_region
      %138 = dma.done [#allocation8], 256
    $region69: #{branch_score_net_forward.1} parent=1 // pred_fallthru
      _
    // Predicated region
    $region70: #{branch_score_net_forward.1} parent=1 // pred_check
      _
    $region71: #{branch_score_net_forward.1} parent=1 // pred_check_branch
      %140 = sbr.rel (0) target = $region73
    $region72: #{branch_score_net_forward.1} parent=1 // pred_region
      %142 = dma.done [#allocation8], 512
    $region73: #{branch_score_net_forward.1} parent=1 // pred_fallthru
      _
    // Predicated region
    $region74: #{branch_score_net_forward.1} parent=1 // pred_check
      _
    $region75: #{branch_score_net_forward.1} parent=1 // pred_check_branch
      %144 = sbr.rel (0) target = $region77
    $region76: #{branch_score_net_forward.1} parent=1 // pred_region
      %146 = dma.done [#allocation11], 512
    $region77: #{branch_score_net_forward.1} parent=1 // pred_fallthru
      _
    // Predicated region
    $region78: #{branch_score_net_forward.1} parent=1 // pred_check
      _
    $region79: #{branch_score_net_forward.1} parent=1 // pred_check_branch
      %148 = sbr.rel (0) target = $region81
    $region80: #{branch_score_net_forward.1} parent=1 // pred_region
      %150 = dma.done [#allocation11], 16
    $region81: #{branch_score_net_forward.1} parent=1 // pred_fallthru
      _
    %v151 = vlaneseq
    %v152 = vshrl.u32 %v151, 7
    %v153 = vlaneseq
    %v154 = vand.u32 %v153, 127
    %v155 = vmul.u32 %v154, 4
    %v156 = vsub.s32 %v152, %v155
    %vm157 = vcmp.ge.s32.totalorder %v156, 0
    %vm158 = vcmp.lt.s32.totalorder %v156, 4
    %vm159 = vmand %vm157, %vm158
    %v160 = vsel %vm159, 1.0, 0.0
    %v161 = vadd.s32 %v152, 8
    %v162 = vadd.s32 %v152, 16
    %v163 = vadd.s32 %v152, 24
    %v164 = vmul.u32 %v154, 16
    %v165 = vsub.s32 %v152, %v164
    %v166 = vsub.s32 %v161, %v164
    %v167 = vsub.s32 %v162, %v164
    %v168 = vsub.s32 %v163, %v164
    %vm169 = vcmp.ge.s32.totalorder %v165, 0
    %vm170 = vcmp.ge.s32.totalorder %v166, 0
    %vm171 = vcmp.ge.s32.totalorder %v167, 0
    %vm172 = vcmp.ge.s32.totalorder %v168, 0
    %vm173 = vcmp.lt.s32.totalorder %v165, 16
    %vm174 = vcmp.lt.s32.totalorder %v166, 16
    %vm175 = vcmp.lt.s32.totalorder %v167, 16
    %vm176 = vcmp.lt.s32.totalorder %v168, 16
    %vm177 = vmand %vm169, %vm173
    %vm178 = vmand %vm170, %vm174
    %vm179 = vmand %vm171, %vm175
    %vm180 = vmand %vm172, %vm176
    %v181 = vsel %vm177, 1.0, 0.0
    %v182 = vsel %vm178, 1.0, 0.0
    %v183 = vsel %vm179, 1.0, 0.0
    %v184 = vsel %vm180, 1.0, 0.0
    %v185 = vsub.s32 %v161, %v155
    %v186 = vsub.s32 %v162, %v155
    %v187 = vsub.s32 %v163, %v155
    %vm188 = vcmp.ge.s32.totalorder %v185, 0
    %vm189 = vcmp.ge.s32.totalorder %v186, 0
    %vm190 = vcmp.ge.s32.totalorder %v187, 0
    %vm191 = vcmp.lt.s32.totalorder %v185, 4
    %vm192 = vcmp.lt.s32.totalorder %v186, 4
    %vm193 = vcmp.lt.s32.totalorder %v187, 4
    %vm194 = vmand %vm188, %vm191
    %vm195 = vmand %vm189, %vm192
    %vm196 = vmand %vm190, %vm193
    %v197 = vsel %vm194, 1.0, 0.0
    %v198 = vsel %vm195, 1.0, 0.0
    %v199 = vsel %vm196, 1.0, 0.0
    %v200 = vld [vmem:[%s12] sm:$0x1]
    %v201 = vld [vmem:[%s12 + $0x1] sm:$0x1]
    %v202 = vld [vmem:[%s12 + $0x2] sm:$0x1]
    %v203 = vld [vmem:[%s12 + $0x3] sm:$0x1]
    %v204 = vld [vmem:[%s12 + $0x4] sm:$0x1]
    %v205 = vld [vmem:[%s12 + $0x5] sm:$0x1]
    %v206 = vld [vmem:[%s2] sm:$0x3]
    %v207 = vld [vmem:[%s3] sm:$0xff]
    %v208 = vld [vmem:[%s3 + $0x8] sm:$0xff]
    %vm209 = vcmask 130048
    %v211 = vsel %vm209, %v206, 0
    %213 = vmatpush.msra.mxu0 0.0
    %214 = vmatpush.msra.mxu0 0.0
    %215 = vmatpush.msra.mxu0 0.0
    %216 = vmatpush.msra.mxu0 0.0
    %217 = vmatpush.msra.mxu0 0.0
    %218 = vmatpush.msra.mxu0 0.0
    %219 = vmatpush.msra.mxu0 0.0
    %220 = vmatpush.msra.mxu0 0.0
    %221 = vmatpush.msra.mxu0 0.0
    %222 = vmatpush.msra.mxu0 0.0
    %223 = vmatpush.msra.mxu0 0.0
    %224 = vmatpush.msra.mxu0 0.0
    %225 = vmatpush.msra.mxu0 0.0
    %226 = vmatpush.msra.mxu0 0.0
    %227 = vmatpush.msra.mxu0 %v208
    %228 = vmatpush.msra.mxu0 %v207
    %229 = vmatmul.f32.gmra.mxu0 %v211
    %v230 = vpop.f32.mrf.mxu0
    %v231 = vadd.f32 0.0, %v230
    %232 = vdwg.mxu0
    %v233 = vld [vmem:[%s1] sm:$0xff]
    %v234 = vld [vmem:[#allocation4] sm:$0xff]
    %v235 = vld [vmem:[#allocation4 + $0x8] sm:$0xff]
    %vm236 = vcmask 15360
    %v238 = vsel %vm236, %v160, 0
    %vm240 = vcmask 1041408
    %v242 = vsel %vm240, %v231, 0
    %244 = vmatpush.msra.mxu0 0.0
    %245 = vmatpush.msra.mxu0 0.0
    %246 = vmatpush.msra.mxu0 0.0
    %247 = vmatpush.msra.mxu0 0.0
    %248 = vmatpush.msra.mxu0 0.0
    %249 = vmatpush.msra.mxu0 0.0
    %250 = vmatpush.msra.mxu0 0.0
    %251 = vmatpush.msra.mxu0 0.0
    %252 = vmatpush.msra.mxu0 0.0
    %253 = vmatpush.msra.mxu0 0.0
    %254 = vmatpush.msra.mxu0 0.0
    %255 = vmatpush.msra.mxu0 0.0
    %256 = vmatpush.msra.mxu0 0.0
    %257 = vmatpush.msra.mxu0 0.0
    %258 = vmatpush.msra.mxu0 0.0
    %259 = vmatpush.msra.mxu0 %v242
    %260 = vmatmul.f32.gmra.mxu0 %v238
    %v261 = vpop.f32.mrf.mxu0
    %v262 = vadd.f32 0.0, %v261
    %263 = vdwg.mxu0
    %v265 = vsel %vm209, %v233, 0
    %267 = vmatpush.msra.mxu0 0.0
    %268 = vmatpush.msra.mxu0 0.0
    %269 = vmatpush.msra.mxu0 0.0
    %270 = vmatpush.msra.mxu0 0.0
    %271 = vmatpush.msra.mxu0 0.0
    %272 = vmatpush.msra.mxu0 0.0
    %273 = vmatpush.msra.mxu0 0.0
    %274 = vmatpush.msra.mxu0 0.0
    %275 = vmatpush.msra.mxu0 0.0
    %276 = vmatpush.msra.mxu0 0.0
    %277 = vmatpush.msra.mxu0 0.0
    %278 = vmatpush.msra.mxu0 0.0
    %279 = vmatpush.msra.mxu0 0.0
    %280 = vmatpush.msra.mxu0 0.0
    %281 = vmatpush.msra.mxu0 %v235
    %282 = vmatpush.msra.mxu0 %v234
    %283 = vmatmul.f32.gmra.mxu0 %v265
    %v284 = vpop.f32.mrf.mxu0
    %v285 = vadd.f32 %v262, %v284
    %286 = vdwg.mxu0
    %v287 = vperm.slane %v200, 0
    %v288 = vadd.f32 %v285, %v287
    %v289 = vmax.f32 %v288, 0.0
    %v290 = vld [vmem:[#allocation6] sm:$0xff]
    %v291 = vld [vmem:[#allocation6 + $0x8] sm:$0xff]
    %v293 = vsel %vm209, %v289, 0
    %295 = vmatpush.msra.mxu0 0.0
    %296 = vmatpush.msra.mxu0 0.0
    %297 = vmatpush.msra.mxu0 0.0
    %298 = vmatpush.msra.mxu0 0.0
    %299 = vmatpush.msra.mxu0 0.0
    %300 = vmatpush.msra.mxu0 0.0
    %301 = vmatpush.msra.mxu0 0.0
    %302 = vmatpush.msra.mxu0 0.0
    %303 = vmatpush.msra.mxu0 0.0
    %304 = vmatpush.msra.mxu0 0.0
    %305 = vmatpush.msra.mxu0 0.0
    %306 = vmatpush.msra.mxu0 0.0
    %307 = vmatpush.msra.mxu0 0.0
    %308 = vmatpush.msra.mxu0 0.0
    %309 = vmatpush.msra.mxu0 %v291
    %310 = vmatpush.msra.mxu0 %v290
    %311 = vmatmul.f32.gmra.mxu0 %v293
    %v312 = vpop.f32.mrf.mxu0
    %v313 = vadd.f32 0.0, %v312
    %314 = vdwg.mxu0
    %v315 = vld [vmem:[%s0] sm:$0xff]
    %v316 = vld [vmem:[%s0 + $0x8] sm:$0xff]
    %v317 = vld [vmem:[%s0 + $0x10] sm:$0xff]
    %v318 = vld [vmem:[%s0 + $0x18] sm:$0xff]
    %v319 = vld [vmem:[%s7] sm:$0xff]
    %v320 = vld [vmem:[%s7 + $0x8] sm:$0xff]
    %v321 = vld [vmem:[%s7 + $0x10] sm:$0xff]
    %v322 = vld [vmem:[%s7 + $0x18] sm:$0xff]
    %vm323 = vcmask 64512
    %v324 = vsel %vm323, %v160, 0
    %v327 = vsel %vm323, %v197, 0
    %v330 = vsel %vm323, %v198, 0
    %v333 = vsel %vm323, %v199, 0
    %335 = vmatpush.msra.mxu0 0.0
    %336 = vmatpush.msra.mxu0 0.0
    %337 = vmatpush.msra.mxu0 0.0
    %338 = vmatpush.msra.mxu0 0.0
    %339 = vmatpush.msra.mxu0 0.0
    %340 = vmatpush.msra.mxu0 0.0
    %341 = vmatpush.msra.mxu0 0.0
    %342 = vmatpush.msra.mxu0 0.0
    %343 = vmatpush.msra.mxu0 0.0
    %344 = vmatpush.msra.mxu0 0.0
    %345 = vmatpush.msra.mxu0 0.0
    %346 = vmatpush.msra.mxu0 0.0
    %347 = vmatpush.msra.mxu0 0.0
    %348 = vmatpush.msra.mxu0 0.0
    %349 = vmatpush.msra.mxu0 0.0
    %350 = vmatpush.msra.mxu0 %v313
    %351 = vmatmul.f32.gmra.mxu0 %v324
    %v352 = vpop.f32.mrf.mxu0
    %v353 = vadd.f32 0.0, %v352
    %354 = vmatmul.f32.gmra.mxu0 %v327
    %v355 = vpop.f32.mrf.mxu0
    %v356 = vadd.f32 0.0, %v355
    %357 = vmatmul.f32.gmra.mxu0 %v330
    %v358 = vpop.f32.mrf.mxu0
    %v359 = vadd.f32 0.0, %v358
    %360 = vmatmul.f32.gmra.mxu0 %v333
    %v361 = vpop.f32.mrf.mxu0
    %v362 = vadd.f32 0.0, %v361
    %363 = vdwg.mxu0
    %vm364 = vcmask 261120
    %v366 = vsel %vm364, %v315, 0
    %v369 = vsel %vm364, %v316, 0
    %v372 = vsel %vm364, %v317, 0
    %v375 = vsel %vm364, %v318, 0
    %377 = vmatpush.msra.mxu0 0.0
    %378 = vmatpush.msra.mxu0 0.0
    %379 = vmatpush.msra.mxu0 0.0
    %380 = vmatpush.msra.mxu0 0.0
    %381 = vmatpush.msra.mxu0 0.0
    %382 = vmatpush.msra.mxu0 0.0
    %383 = vmatpush.msra.mxu0 0.0
    %384 = vmatpush.msra.mxu0 0.0
    %385 = vmatpush.msra.mxu0 0.0
    %386 = vmatpush.msra.mxu0 0.0
    %387 = vmatpush.msra.mxu0 0.0
    %388 = vmatpush.msra.mxu0 0.0
    %389 = vmatpush.msra.mxu0 %v322
    %390 = vmatpush.msra.mxu0 %v321
    %391 = vmatpush.msra.mxu0 %v320
    %392 = vmatpush.msra.mxu0 %v319
    %393 = vmatmul.f32.gmra.mxu0 %v366
    %v394 = vpop.f32.mrf.mxu0
    %v395 = vadd.f32 %v353, %v394
    %396 = vmatmul.f32.gmra.mxu0 %v369
    %v397 = vpop.f32.mrf.mxu0
    %v398 = vadd.f32 %v356, %v397
    %399 = vmatmul.f32.gmra.mxu0 %v372
    %v400 = vpop.f32.mrf.mxu0
    %v401 = vadd.f32 %v359, %v400
    %402 = vmatmul.f32.gmra.mxu0 %v375
    %v403 = vpop.f32.mrf.mxu0
    %v404 = vadd.f32 %v362, %v403
    %405 = vdwg.mxu0
    %v406 = vld [vmem:[#allocation2] sm:$0xff]
    %v407 = vld [vmem:[#allocation2 + $0x8] sm:$0xff]
    %v408 = vperm.slane %v201, 0
    %409 = vmatpush.msra.mxu0 0.0
    %410 = vmatpush.msra.mxu0 0.0
    %411 = vmatpush.msra.mxu0 0.0
    %412 = vmatpush.msra.mxu0 0.0
    %413 = vmatpush.msra.mxu0 0.0
    %414 = vmatpush.msra.mxu0 0.0
    %415 = vmatpush.msra.mxu0 0.0
    %416 = vmatpush.msra.mxu0 0.0
    %417 = vmatpush.msra.mxu0 0.0
    %418 = vmatpush.msra.mxu0 0.0
    %419 = vmatpush.msra.mxu0 0.0
    %420 = vmatpush.msra.mxu0 0.0
    %421 = vmatpush.msra.mxu0 0.0
    %422 = vmatpush.msra.mxu0 0.0
    %423 = vmatpush.msra.mxu0 %v407
    %424 = vmatpush.msra.mxu0 %v406
    %425 = vmatmul.f32.gmra.mxu0 %v211
    %v426 = vpop.f32.mrf.mxu0
    %v427 = vadd.f32 %v408, %v426
    %428 = vdwg.mxu0
    %v429 = vld [vmem:[#allocation7] sm:$0xff]
    %v430 = vld [vmem:[#allocation7 + $0x8] sm:$0xff]
    %v431 = vperm.slane %v202, 0
    %v433 = vsel %vm209, %v395, 0
    %v436 = vsel %vm209, %v398, 0
    %v439 = vsel %vm209, %v401, 0
    %v442 = vsel %vm209, %v404, 0
    %444 = vmatpush.msra.mxu0 0.0
    %445 = vmatpush.msra.mxu0 0.0
    %446 = vmatpush.msra.mxu0 0.0
    %447 = vmatpush.msra.mxu0 0.0
    %448 = vmatpush.msra.mxu0 0.0
    %449 = vmatpush.msra.mxu0 0.0
    %450 = vmatpush.msra.mxu0 0.0
    %451 = vmatpush.msra.mxu0 0.0
    %452 = vmatpush.msra.mxu0 0.0
    %453 = vmatpush.msra.mxu0 0.0
    %454 = vmatpush.msra.mxu0 0.0
    %455 = vmatpush.msra.mxu0 0.0
    %456 = vmatpush.msra.mxu0 0.0
    %457 = vmatpush.msra.mxu0 0.0
    %458 = vmatpush.msra.mxu0 %v430
    %459 = vmatpush.msra.mxu0 %v429
    %460 = vmatmul.f32.gmra.mxu0 %v433
    %v461 = vpop.f32.mrf.mxu0
    %v462 = vadd.f32 %v431, %v461
    %463 = vmatmul.f32.gmra.mxu0 %v436
    %v464 = vpop.f32.mrf.mxu0
    %v465 = vadd.f32 %v431, %v464
    %466 = vmatmul.f32.gmra.mxu0 %v439
    %v467 = vpop.f32.mrf.mxu0
    %v468 = vadd.f32 %v431, %v467
    %469 = vmatmul.f32.gmra.mxu0 %v442
    %v470 = vpop.f32.mrf.mxu0
    %v471 = vadd.f32 %v431, %v470
    %472 = vdwg.mxu0
    %v474 = vsel %vm236, %v181, 0
    %v477 = vsel %vm236, %v182, 0
    %v480 = vsel %vm236, %v183, 0
    %v483 = vsel %vm236, %v184, 0
    %v486 = vsel %vm240, %v427, 0
    %488 = vmatpush.msra.mxu0 0.0
    %489 = vmatpush.msra.mxu0 0.0
    %490 = vmatpush.msra.mxu0 0.0
    %491 = vmatpush.msra.mxu0 0.0
    %492 = vmatpush.msra.mxu0 0.0
    %493 = vmatpush.msra.mxu0 0.0
    %494 = vmatpush.msra.mxu0 0.0
    %495 = vmatpush.msra.mxu0 0.0
    %496 = vmatpush.msra.mxu0 0.0
    %497 = vmatpush.msra.mxu0 0.0
    %498 = vmatpush.msra.mxu0 0.0
    %499 = vmatpush.msra.mxu0 0.0
    %500 = vmatpush.msra.mxu0 0.0
    %501 = vmatpush.msra.mxu0 0.0
    %502 = vmatpush.msra.mxu0 0.0
    %503 = vmatpush.msra.mxu0 %v486
    %504 = vmatmul.f32.gmra.mxu0 %v474
    %v505 = vpop.f32.mrf.mxu0
    %v506 = vadd.f32 0.0, %v505
    %507 = vmatmul.f32.gmra.mxu0 %v477
    %v508 = vpop.f32.mrf.mxu0
    %v509 = vadd.f32 0.0, %v508
    %510 = vmatmul.f32.gmra.mxu0 %v480
    %v511 = vpop.f32.mrf.mxu0
    %v512 = vadd.f32 0.0, %v511
    %513 = vmatmul.f32.gmra.mxu0 %v483
    %v514 = vpop.f32.mrf.mxu0
    %v515 = vadd.f32 0.0, %v514
    %516 = vdwg.mxu0
    %v517 = vmul.f32 %v462, %v506
    %v518 = vmul.f32 %v465, %v509
    %v519 = vmul.f32 %v468, %v512
    %v520 = vmul.f32 %v471, %v515
    %v521 = vld [vmem:[#allocation9] sm:$0xff]
    %v522 = vld [vmem:[#allocation9 + $0x8] sm:$0xff]
    %v523 = vld [vmem:[#allocation9 + $0x10] sm:$0xff]
    %v524 = vld [vmem:[#allocation9 + $0x18] sm:$0xff]
    %v525 = vperm.slane %v203, 0
    %v527 = vsel %vm364, %v517, 0
    %v530 = vsel %vm364, %v518, 0
    %v533 = vsel %vm364, %v519, 0
    %v536 = vsel %vm364, %v520, 0
    %538 = vmatpush.msra.mxu0 0.0
    %539 = vmatpush.msra.mxu0 0.0
    %540 = vmatpush.msra.mxu0 0.0
    %541 = vmatpush.msra.mxu0 0.0
    %542 = vmatpush.msra.mxu0 0.0
    %543 = vmatpush.msra.mxu0 0.0
    %544 = vmatpush.msra.mxu0 0.0
    %545 = vmatpush.msra.mxu0 0.0
    %546 = vmatpush.msra.mxu0 0.0
    %547 = vmatpush.msra.mxu0 0.0
    %548 = vmatpush.msra.mxu0 0.0
    %549 = vmatpush.msra.mxu0 0.0
    %550 = vmatpush.msra.mxu0 %v524
    %551 = vmatpush.msra.mxu0 %v523
    %552 = vmatpush.msra.mxu0 %v522
    %553 = vmatpush.msra.mxu0 %v521
    %554 = vmatmul.f32.gmra.mxu0 %v527
    %v555 = vpop.f32.mrf.mxu0
    %v556 = vadd.f32 %v525, %v555
    %557 = vmatmul.f32.gmra.mxu0 %v530
    %v558 = vpop.f32.mrf.mxu0
    %v559 = vadd.f32 %v525, %v558
    %560 = vmatmul.f32.gmra.mxu0 %v533
    %v561 = vpop.f32.mrf.mxu0
    %v562 = vadd.f32 %v525, %v561
    %563 = vmatmul.f32.gmra.mxu0 %v536
    %v564 = vpop.f32.mrf.mxu0
    %v565 = vadd.f32 %v525, %v564
    %566 = vdwg.mxu0
    %v567 = vmax.f32 %v556, 0.0
    %v568 = vmax.f32 %v559, 0.0
    %v569 = vmax.f32 %v562, 0.0
    %v570 = vmax.f32 %v565, 0.0
    %v571 = vld [vmem:[#allocation10] sm:$0xff]
    %v572 = vld [vmem:[#allocation10 + $0x8] sm:$0xff]
    %v573 = vld [vmem:[#allocation10 + $0x10] sm:$0xff]
    %v574 = vld [vmem:[#allocation10 + $0x18] sm:$0xff]
    %v575 = vperm.slane %v204, 0
    %v577 = vsel %vm364, %v567, 0
    %v580 = vsel %vm364, %v568, 0
    %v583 = vsel %vm364, %v569, 0
    %v586 = vsel %vm364, %v570, 0
    %588 = vmatpush.msra.mxu0 0.0
    %589 = vmatpush.msra.mxu0 0.0
    %590 = vmatpush.msra.mxu0 0.0
    %591 = vmatpush.msra.mxu0 0.0
    %592 = vmatpush.msra.mxu0 0.0
    %593 = vmatpush.msra.mxu0 0.0
    %594 = vmatpush.msra.mxu0 0.0
    %595 = vmatpush.msra.mxu0 0.0
    %596 = vmatpush.msra.mxu0 0.0
    %597 = vmatpush.msra.mxu0 0.0
    %598 = vmatpush.msra.mxu0 0.0
    %599 = vmatpush.msra.mxu0 0.0
    %600 = vmatpush.msra.mxu0 %v574
    %601 = vmatpush.msra.mxu0 %v573
    %602 = vmatpush.msra.mxu0 %v572
    %603 = vmatpush.msra.mxu0 %v571
    %604 = vmatmul.f32.gmra.mxu0 %v577
    %v605 = vpop.f32.mrf.mxu0
    %v606 = vadd.f32 %v575, %v605
    %607 = vmatmul.f32.gmra.mxu0 %v580
    %v608 = vpop.f32.mrf.mxu0
    %v609 = vadd.f32 %v575, %v608
    %610 = vmatmul.f32.gmra.mxu0 %v583
    %v611 = vpop.f32.mrf.mxu0
    %v612 = vadd.f32 %v575, %v611
    %613 = vmatmul.f32.gmra.mxu0 %v586
    %v614 = vpop.f32.mrf.mxu0
    %v615 = vadd.f32 %v575, %v614
    %616 = vdwg.mxu0
    %v617 = vmax.f32 %v606, 0.0
    %v618 = vmax.f32 %v609, 0.0
    %v619 = vmax.f32 %v612, 0.0
    %v620 = vmax.f32 %v615, 0.0
    %v621 = vld [vmem:[#allocation12] sm:$0x1]
    %623 = vset.pattern.permute.xlu0 0
    %624 = vperm.xlu0 %623, %v205
    %v625 = vpop.permute.xlu0 %624
    %v628 = vsel %vm364, %v621, 0
    %v631 = vsel %vm364, %v617, 0
    %v634 = vsel %vm364, %v618, 0
    %v637 = vsel %vm364, %v619, 0
    %v640 = vsel %vm364, %v620, 0
    %642 = vmatpush.xpose.msra.mxu0 0.0
    %643 = vmatpush.xpose.msra.mxu0 0.0
    %644 = vmatpush.xpose.msra.mxu0 0.0
    %645 = vmatpush.xpose.msra.mxu0 0.0
    %646 = vmatpush.xpose.msra.mxu0 0.0
    %647 = vmatpush.xpose.msra.mxu0 0.0
    %648 = vmatpush.xpose.msra.mxu0 0.0
    %649 = vmatpush.xpose.msra.mxu0 0.0
    %650 = vmatpush.xpose.msra.mxu0 0.0
    %651 = vmatpush.xpose.msra.mxu0 0.0
    %652 = vmatpush.xpose.msra.mxu0 0.0
    %653 = vmatpush.xpose.msra.mxu0 0.0
    %654 = vmatpush.xpose.msra.mxu0 %v640
    %655 = vmatpush.xpose.msra.mxu0 %v637
    %656 = vmatpush.xpose.msra.mxu0 %v634
    %657 = vmatpush.xpose.msra.mxu0 %v631
    %658 = vmatmul.f32.gmra.mxu0 %v628
    %v659 = vpop.f32.mrf.mxu0
    %v660 = vadd.f32 %v625, %v659
    %661 = vdwg.mxu0
    %v662 = vsub.f32 0.0, %v660
    %v663 = vmul.f32 %v662, 1.442695
    %v664 = vpow.pop %v663
    %v665 = vadd.f32 %v664, 1.0
    %v666 = vrcp.pop %v665
    %vm667 = vcmask 253952
    %668 = vst.msk [vmem:[%s13] sm:$0x1] %vm667, %v666
    // Predicated region
    $region82: #{branch_score_net_forward.1} parent=1 // pred_check
      _
    $region83: #{branch_score_net_forward.1} parent=1 // pred_check_branch
      %670 = sbr.rel (0) target = $region85
    $region84: #{branch_score_net_forward.1} parent=1 // pred_region
      _
    $region85: #{branch_score_net_forward.1} parent=1 // pred_fallthru
      _
    // Predicated region
    $region86: #{branch_score_net_forward.1} parent=1 // pred_check
      _
    $region87: #{branch_score_net_forward.1} parent=1 // pred_check_branch
      %672 = sbr.rel (0) target = $region89
    $region88: #{branch_score_net_forward.1} parent=1 // pred_region
      _
    $region89: #{branch_score_net_forward.1} parent=1 // pred_fallthru
      _
    %673 = vsyncpa [#allocation3], 1
    %674 = vsyncpa [#allocation5], 1
    %675 = vsyncpa [#allocation8], 1
    %676 = vsyncpa [#allocation11], 1

</llo_original>
